<compile_context>
chip_gen: v7x
topology: tpu7x:2x2x1
jax: 0.10.0
libtpu: 0.0.40
codegen_flags: <defaults>
</compile_context>

<pallas_src>
import functools

import jax
import jax.numpy as jnp
from jax.experimental import pallas as pl
from jax.experimental.pallas import tpu as pltpu


_SMOOTH = 1.0
_MAX_ROWS_PER_BLOCK = 256          # multiple of 8; row-block size for large batches


def _cdiv(a, b):
    return -(-a // b)


def _round_up(a, b):
    return _cdiv(a, b) * b


def _chip_params():
    """Generation-aware (block budget bytes, scoped-VMEM limit bytes, #TensorCores)."""
    kind = ""
    try:
        kind = jax.devices()[0].device_kind.lower()
    except Exception:
        pass
    if "v7" in kind:
        # v7x: 64 MiB physical VMEM, 2 TensorCores/chip.
        # 2 inputs x 2 pipeline buffers x 8 MiB = 32 MiB of buffers < 48 MiB limit.
        return 8 * 1024 * 1024, 48 * 1024 * 1024, 2
    # v5e / v6e (and default): 128 MiB VMEM, 1 TensorCore.
    # 2 inputs x 2 buffers x 12 MiB = 48 MiB < 64 MiB limit.
    return 12 * 1024 * 1024, 64 * 1024 * 1024, 1


def _dice_partial_kernel(x_ref, t_ref, inter_out, denom_out, inter_acc, denom_acc,
                         *, D, K, tD):
    p = pl.program_id(1)
    k = pl.program_id(2)

    @pl.when(k == 0)
    def _init():
        inter_acc[...] = jnp.zeros_like(inter_acc)
        denom_acc[...] = jnp.zeros_like(denom_acc)

    x = x_ref[...].astype(jnp.float32)       # (tN, tD)
    t = t_ref[...].astype(jnp.float32)       # (tN, tD)

    # Valid lanes in this *nominal* D-tile (<= 0 for the fully-masked duplicate
    # tile an odd chunk count can leave on the second core).
    rem = D - (p * K + k) * tD

    def _accumulate(inter_part, denom_part):
        inter_acc[...] += jnp.sum(inter_part, axis=1, keepdims=True)
        denom_acc[...] += jnp.sum(denom_part, axis=1, keepdims=True)

    @pl.when(rem >= tD)                      # interior tile: unmasked hot path
    def _full():
        _accumulate(x * t, x + t)

    @pl.when(rem < tD)                       # ragged tail (or fully-masked) tile
    def _tail():
        lane = jax.lax.broadcasted_iota(jnp.int32, x.shape, 1)
        valid = lane < rem
        _accumulate(jnp.where(valid, x * t, 0.0), jnp.where(valid, x + t, 0.0))

    @pl.when(k == pl.num_programs(2) - 1)
    def _dump():
        inter_out[...] = inter_acc[...]
        denom_out[...] = denom_acc[...]


def dice_loss(inputs, targets):
    """Soft Dice loss matching PyTorch DiceLoss.forward semantics.

    Inputs are used as-is (the reference module applies no activation) and may
    be bf16 / integer masks: no wrapper-side cast or pad, the per-tile upcast
    to f32 happens inside the kernel.
    """
    N = targets.shape[0]
    x = inputs.reshape(N, -1)
    t = targets.reshape(N, -1)
    D = x.shape[1]
    assert t.shape == (N, D)

    block_budget, vmem_limit, n_cores = _chip_params()

    # ---- Row-block grid axis ("parallel").  Small batches keep tN == N (the
    # full-first-dim block waives the 8-sublane rule); large batches use
    # 256-row blocks so tD never collapses and VMEM stays bounded.
    if N <= _MAX_ROWS_PER_BLOCK:
        tN, NB = N, 1
    else:
        tN = _MAX_ROWS_PER_BLOCK
        NB = _cdiv(N, tN)        # ragged last row block: OOB rows never mix into
                                 # real rows and their output writes are dropped.

    # ---- Lane-aligned D tile sized from the per-input VMEM block budget.
    itemsize = max(jnp.dtype(x.dtype).itemsize, jnp.dtype(t.dtype).itemsize)
    tD_budget = max(128, (block_budget // (tN * itemsize)) // 128 * 128)
    if D <= tD_budget:
        tD, chunks = D, 1        # single tile per row block; no tail masking needed
    else:
        tD = tD_budget           # >= 2048 lanes by construction (tN <= 256)
        chunks = _cdiv(D, tD)

    # ---- Megacore reduction split: only where 2 TensorCores exist and the row
    # axis does not already provide parallel work.
    P = 2 if (n_cores >= 2 and NB == 1 and chunks >= 2) else 1
    if P == 2 and chunks % 2:
        # Rebalance the tile so both cores get real tiles (avoid one wasted
        # fully-masked duplicate tile on core 1).
        alt_tD = _round_up(_cdiv(D, chunks + 1), 128)
        alt_chunks = _cdiv(D, alt_tD)
        if alt_chunks % 2 == 0:
            tD, chunks = alt_tD, alt_chunks
    K = _cdiv(chunks, P)

    last_chunk = chunks - 1

    def in_map(nb, p, k):
        # Clamp so a possible extra tile on core 1 re-reads a valid block; the
        # kernel fully masks it (rem <= 0), so it contributes zero.
        return (nb, jnp.minimum(p * K + k, last_chunk))

    out_map = lambda nb, p, k: (p, nb, 0)

    kernel = functools.partial(_dice_partial_kernel, D=D, K=K, tD=tD)

    inter_p, denom_p = pl.pallas_call(
        kernel,
        out_shape=(
            jax.ShapeDtypeStruct((P, N, 1), jnp.float32),
            jax.ShapeDtypeStruct((P, N, 1), jnp.float32),
        ),
        grid_spec=pltpu.PrefetchScalarGridSpec(
            num_scalar_prefetch=0,
            grid=(NB, P, K),
            in_specs=[
                pl.BlockSpec((tN, tD), in_map),
                pl.BlockSpec((tN, tD), in_map),
            ],
            out_specs=(
                pl.BlockSpec((None, tN, 1), out_map),
                pl.BlockSpec((None, tN, 1), out_map),
            ),
            scratch_shapes=[
                pltpu.VMEM((tN, 1), jnp.float32),
                pltpu.VMEM((tN, 1), jnp.float32),
            ],
        ),
        compiler_params=pltpu.CompilerParams(
            dimension_semantics=("parallel", "parallel", "arbitrary"),
            vmem_limit_bytes=vmem_limit,
        ),
    )(x, t)

    # Tiny O(P*N) epilogue: fold core partials, then per-sample ratio + mean
    # (must happen after all D-partials are summed).
    inter = jnp.sum(inter_p, axis=(0, 2))
    denom = jnp.sum(denom_p, axis=(0, 2))
    per_sample = (2.0 * inter + _SMOOTH) / (denom + _SMOOTH)
    return 1.0 - jnp.sum(per_sample) / N


def _dice_loss_ref(inputs, targets):
    N = targets.shape[0]
    x = inputs.reshape(N, -1).astype(jnp.float32)
    t = targets.reshape(N, -1).astype(jnp.float32)
    inter = jnp.sum(x * t, axis=1)
    per = (2.0 * inter + _SMOOTH) / (jnp.sum(x, axis=1) + jnp.sum(t, axis=1) + _SMOOTH)
    return 1.0 - jnp.sum(per) / N


if __name__ == "__main__":
    key = jax.random.PRNGKey(0)
    k1, k2 = jax.random.split(key)

    # NCHW inputs, as the PyTorch module would receive.  DiceLoss.forward
    # itself applies no activation; probabilities come from the caller.
    N, C, H, W = 2, 4, 16, 16
    inputs = jax.nn.sigmoid(jax.random.normal(k1, (N, C, H, W), dtype=jnp.float32))
    targets = (jax.random.uniform(k2, (N, C, H, W)) > 0.5).astype(jnp.float32)

    loss = jax.block_until_ready(dice_loss(inputs, targets))
    ref = jax.block_until_ready(_dice_loss_ref(inputs, targets))

    assert jnp.allclose(loss, ref, rtol=1e-5, atol=1e-6), (loss, ref)
    print("KERNEL_OK")
</pallas_src>

<mosaic_0001>
module attributes {stable_mosaic.version = 11 : i64} {
  func.func @_dice_partial_kernel(%arg0: i32, %arg1: i32, %arg2: i32, %arg3: memref<2x1024xf32, #tpu.memory_space<vmem>>, %arg4: memref<2x1024xf32, #tpu.memory_space<vmem>>, %arg5: memref<1x2x1xf32, #tpu.memory_space<vmem>>, %arg6: memref<1x2x1xf32, #tpu.memory_space<vmem>>, %arg7: memref<2x1xf32, #tpu.memory_space<vmem>>, %arg8: memref<2x1xf32, #tpu.memory_space<vmem>>) attributes {dimension_semantics = [#tpu.dimension_semantics<parallel>, #tpu.dimension_semantics<parallel>, #tpu.dimension_semantics<arbitrary>], iteration_bounds = array<i64: 1, 1, 1>, scalar_prefetch = 0 : i64, scratch_operands = 2 : i64, tpu.core_type = #tpu.core_type<tc>, window_params = [{transform_indices = @transform_0, window_bounds = array<i64: 2, 1024>}, {transform_indices = @transform_1, window_bounds = array<i64: 2, 1024>}, {transform_indices = @transform_2, window_bounds = array<i64: 1, 2, 1>}, {transform_indices = @transform_3, window_bounds = array<i64: 1, 2, 1>}]} {
    %c0_i32 = arith.constant 0 : i32
    %0 = arith.cmpi eq, %arg2, %c0_i32 : i32
    %1 = arith.extui %0 : i1 to i32
    %c0_i32_0 = arith.constant 0 : i32
    %2 = arith.cmpi ne, %1, %c0_i32_0 : i32
    scf.if %2 {
      %cst = arith.constant 0.000000e+00 : f32
      %18 = vector.broadcast %cst : f32 to vector<2x1xf32>
      %c0_11 = arith.constant 0 : index
      %c0_12 = arith.constant 0 : index
      %19 = vector.load %arg7[%c0_11, %c0_12] : memref<2x1xf32, #tpu.memory_space<vmem>>, vector<2x1xf32>
      tpu.vector_store %arg7[%c0_11, %c0_12], %18 {strides = array<i32>} : memref<2x1xf32, #tpu.memory_space<vmem>>, vector<2x1xf32>,
      %cst_13 = arith.constant 0.000000e+00 : f32
      %20 = vector.broadcast %cst_13 : f32 to vector<2x1xf32>
      %c0_14 = arith.constant 0 : index
      %c0_15 = arith.constant 0 : index
      %21 = vector.load %arg8[%c0_14, %c0_15] : memref<2x1xf32, #tpu.memory_space<vmem>>, vector<2x1xf32>
      tpu.vector_store %arg8[%c0_14, %c0_15], %20 {strides = array<i32>} : memref<2x1xf32, #tpu.memory_space<vmem>>, vector<2x1xf32>,
    } else {
    }
    %c0 = arith.constant 0 : index
    %c0_1 = arith.constant 0 : index
    %3 = vector.load %arg3[%c0, %c0_1] : memref<2x1024xf32, #tpu.memory_space<vmem>>, vector<2x1024xf32>
    %c0_2 = arith.constant 0 : index
    %c0_3 = arith.constant 0 : index
    %4 = vector.load %arg4[%c0_2, %c0_3] : memref<2x1024xf32, #tpu.memory_space<vmem>>, vector<2x1024xf32>
    %c1_i32 = arith.constant 1 : i32
    %5 = arith.muli %arg1, %c1_i32 : i32
    %6 = arith.addi %5, %arg2 : i32
    %c1024_i32 = arith.constant 1024 : i32
    %7 = arith.muli %6, %c1024_i32 : i32
    %c1024_i32_4 = arith.constant 1024 : i32
    %8 = arith.subi %c1024_i32_4, %7 : i32
    %c1024_i32_5 = arith.constant 1024 : i32
    %9 = arith.cmpi sge, %8, %c1024_i32_5 : i32
    %10 = arith.extui %9 : i1 to i32
    %c0_i32_6 = arith.constant 0 : i32
    %11 = arith.cmpi ne, %10, %c0_i32_6 : i32
    scf.if %11 {
      %18 = arith.mulf %3, %4 : vector<2x1024xf32>
      %19 = arith.addf %3, %4 : vector<2x1024xf32>
      %c0_11 = arith.constant 0 : index
      %c0_12 = arith.constant 0 : index
      %20 = vector.load %arg7[%c0_11, %c0_12] : memref<2x1xf32, #tpu.memory_space<vmem>>, vector<2x1xf32>
      %cst = arith.constant dense<0.000000e+00> : vector<2xf32>
      %21 = vector.multi_reduction <add>, %18, %cst [1] : vector<2x1024xf32> to vector<2xf32>
      %22 = vector.shape_cast %21 : vector<2xf32> to vector<2x1xf32>
      %23 = arith.addf %20, %22 : vector<2x1xf32>
      %c0_13 = arith.constant 0 : index
      %c0_14 = arith.constant 0 : index
      %24 = vector.load %arg7[%c0_13, %c0_14] : memref<2x1xf32, #tpu.memory_space<vmem>>, vector<2x1xf32>
      tpu.vector_store %arg7[%c0_13, %c0_14], %23 {strides = array<i32>} : memref<2x1xf32, #tpu.memory_space<vmem>>, vector<2x1xf32>,
      %c0_15 = arith.constant 0 : index
      %c0_16 = arith.constant 0 : index
      %25 = vector.load %arg8[%c0_15, %c0_16] : memref<2x1xf32, #tpu.memory_space<vmem>>, vector<2x1xf32>
      %cst_17 = arith.constant dense<0.000000e+00> : vector<2xf32>
      %26 = vector.multi_reduction <add>, %19, %cst_17 [1] : vector<2x1024xf32> to vector<2xf32>
      %27 = vector.shape_cast %26 : vector<2xf32> to vector<2x1xf32>
      %28 = arith.addf %25, %27 : vector<2x1xf32>
      %c0_18 = arith.constant 0 : index
      %c0_19 = arith.constant 0 : index
      %29 = vector.load %arg8[%c0_18, %c0_19] : memref<2x1xf32, #tpu.memory_space<vmem>>, vector<2x1xf32>
      tpu.vector_store %arg8[%c0_18, %c0_19], %28 {strides = array<i32>} : memref<2x1xf32, #tpu.memory_space<vmem>>, vector<2x1xf32>,
    } else {
    }
    %c1024_i32_7 = arith.constant 1024 : i32
    %12 = arith.cmpi slt, %8, %c1024_i32_7 : i32
    %13 = arith.extui %12 : i1 to i32
    %c0_i32_8 = arith.constant 0 : i32
    %14 = arith.cmpi ne, %13, %c0_i32_8 : i32
    scf.if %14 {
      %18 = tpu.iota {dimensions = array<i32: 1>} : vector<2x1024xi32>
      %19 = vector.broadcast %8 : i32 to vector<2x1024xi32>
      %20 = arith.cmpi slt, %18, %19 : vector<2x1024xi32>
      %21 = arith.mulf %3, %4 : vector<2x1024xf32>
      %cst = arith.constant 0.000000e+00 : f32
      %22 = vector.broadcast %cst : f32 to vector<2x1024xf32>
      %23 = arith.select %20, %21, %22 : vector<2x1024xi1>, vector<2x1024xf32>
      %24 = arith.addf %3, %4 : vector<2x1024xf32>
      %cst_11 = arith.constant 0.000000e+00 : f32
      %25 = vector.broadcast %cst_11 : f32 to vector<2x1024xf32>
      %26 = arith.select %20, %24, %25 : vector<2x1024xi1>, vector<2x1024xf32>
      %c0_12 = arith.constant 0 : index
      %c0_13 = arith.constant 0 : index
      %27 = vector.load %arg7[%c0_12, %c0_13] : memref<2x1xf32, #tpu.memory_space<vmem>>, vector<2x1xf32>
      %cst_14 = arith.constant dense<0.000000e+00> : vector<2xf32>
      %28 = vector.multi_reduction <add>, %23, %cst_14 [1] : vector<2x1024xf32> to vector<2xf32>
      %29 = vector.shape_cast %28 : vector<2xf32> to vector<2x1xf32>
      %30 = arith.addf %27, %29 : vector<2x1xf32>
      %c0_15 = arith.constant 0 : index
      %c0_16 = arith.constant 0 : index
      %31 = vector.load %arg7[%c0_15, %c0_16] : memref<2x1xf32, #tpu.memory_space<vmem>>, vector<2x1xf32>
      tpu.vector_store %arg7[%c0_15, %c0_16], %30 {strides = array<i32>} : memref<2x1xf32, #tpu.memory_space<vmem>>, vector<2x1xf32>,
      %c0_17 = arith.constant 0 : index
      %c0_18 = arith.constant 0 : index
      %32 = vector.load %arg8[%c0_17, %c0_18] : memref<2x1xf32, #tpu.memory_space<vmem>>, vector<2x1xf32>
      %cst_19 = arith.constant dense<0.000000e+00> : vector<2xf32>
      %33 = vector.multi_reduction <add>, %26, %cst_19 [1] : vector<2x1024xf32> to vector<2xf32>
      %34 = vector.shape_cast %33 : vector<2xf32> to vector<2x1xf32>
      %35 = arith.addf %32, %34 : vector<2x1xf32>
      %c0_20 = arith.constant 0 : index
      %c0_21 = arith.constant 0 : index
      %36 = vector.load %arg8[%c0_20, %c0_21] : memref<2x1xf32, #tpu.memory_space<vmem>>, vector<2x1xf32>
      tpu.vector_store %arg8[%c0_20, %c0_21], %35 {strides = array<i32>} : memref<2x1xf32, #tpu.memory_space<vmem>>, vector<2x1xf32>,
    } else {
    }
    %c0_i32_9 = arith.constant 0 : i32
    %15 = arith.cmpi eq, %arg2, %c0_i32_9 : i32
    %16 = arith.extui %15 : i1 to i32
    %c0_i32_10 = arith.constant 0 : i32
    %17 = arith.cmpi ne, %16, %c0_i32_10 : i32
    scf.if %17 {
      %c0_11 = arith.constant 0 : index
      %c0_12 = arith.constant 0 : index
      %18 = vector.load %arg7[%c0_11, %c0_12] : memref<2x1xf32, #tpu.memory_space<vmem>>, vector<2x1xf32>
      %c0_13 = arith.constant 0 : index
      %c0_14 = arith.constant 0 : index
      %c0_15 = arith.constant 0 : index
      %19 = vector.load %arg5[%c0_13, %c0_14, %c0_15] : memref<1x2x1xf32, #tpu.memory_space<vmem>>, vector<1x2x1xf32>
      %20 = vector.shape_cast %19 : vector<1x2x1xf32> to vector<2x1xf32>
      %21 = vector.shape_cast %18 : vector<2x1xf32> to vector<1x2x1xf32>
      tpu.vector_store %arg5[%c0_13, %c0_14, %c0_15], %21 {strides = array<i32>} : memref<1x2x1xf32, #tpu.memory_space<vmem>>, vector<1x2x1xf32>,
      %c0_16 = arith.constant 0 : index
      %c0_17 = arith.constant 0 : index
      %22 = vector.load %arg8[%c0_16, %c0_17] : memref<2x1xf32, #tpu.memory_space<vmem>>, vector<2x1xf32>
      %c0_18 = arith.constant 0 : index
      %c0_19 = arith.constant 0 : index
      %c0_20 = arith.constant 0 : index
      %23 = vector.load %arg6[%c0_18, %c0_19, %c0_20] : memref<1x2x1xf32, #tpu.memory_space<vmem>>, vector<1x2x1xf32>
      %24 = vector.shape_cast %23 : vector<1x2x1xf32> to vector<2x1xf32>
      %25 = vector.shape_cast %22 : vector<2x1xf32> to vector<1x2x1xf32>
      tpu.vector_store %arg6[%c0_18, %c0_19, %c0_20], %25 {strides = array<i32>} : memref<1x2x1xf32, #tpu.memory_space<vmem>>, vector<1x2x1xf32>,
    } else {
    }
    return
  }
  func.func @transform_0(%arg0: i32, %arg1: i32, %arg2: i32) -> (i32, i32) {
    %c1_i32 = arith.constant 1 : i32
    %0 = arith.muli %arg1, %c1_i32 : i32
    %1 = arith.addi %0, %arg2 : i32
    %c0_i32 = arith.constant 0 : i32
    %2 = arith.minsi %1, %c0_i32 : i32
    %c0_i32_0 = arith.constant 0 : i32
    return %arg0, %2 : i32, i32
  }
  func.func @transform_1(%arg0: i32, %arg1: i32, %arg2: i32) -> (i32, i32) {
    %c1_i32 = arith.constant 1 : i32
    %0 = arith.muli %arg1, %c1_i32 : i32
    %1 = arith.addi %0, %arg2 : i32
    %c0_i32 = arith.constant 0 : i32
    %2 = arith.minsi %1, %c0_i32 : i32
    %c0_i32_0 = arith.constant 0 : i32
    return %arg0, %2 : i32, i32
  }
  func.func @transform_2(%arg0: i32, %arg1: i32, %arg2: i32) -> (i32, i32, i32) {
    %c0_i32 = arith.constant 0 : i32
    %c0_i32_0 = arith.constant 0 : i32
    return %arg1, %arg0, %c0_i32 : i32, i32, i32
  }
  func.func @transform_3(%arg0: i32, %arg1: i32, %arg2: i32) -> (i32, i32, i32) {
    %c0_i32 = arith.constant 0 : i32
    %c0_i32_0 = arith.constant 0 : i32
    return %arg1, %arg0, %c0_i32 : i32, i32, i32
  }
}

</mosaic_0001>

<llo_original>
// kernel: tpu_custom_call.1
$region0: #{tpu_custom_call.1}
  #allocation0 [shape = 'u32[]', space=smem, size = 0x4, offset = 0x4, fixed_abs, tag = 'smem constant byte address 0x4 - core index']
  #allocation1 [shape = 'u32[144,128]{1,0:T(1,128)}', space=vmem, size = 0x12000, scoped, tag = 'internal scratch']
  #allocation2 [shape = 'f32[2,1]{1,0:T(2,128)}', space=vmem, size = 0x400, scoped, tag = 'scratch operand']
  #allocation3 [shape = 'f32[2,1]{1,0:T(2,128)}', space=vmem, size = 0x400, scoped, tag = 'scratch operand']
  %s0 = inlined_call_operand.hbm [shape: f32[2,1024], index: 0, kind: input, shape index: {}]
  %s1 = inlined_call_operand.hbm [shape: f32[2,1024], index: 1, kind: input, shape index: {}]
  %s2 = inlined_call_operand.hbm [shape: f32[1,2,1], index: 2, kind: output, shape index: {0}]
  %s3 = inlined_call_operand.hbm [shape: f32[1,2,1], index: 3, kind: output, shape index: {1}]
  %4 = xla_tuple %s2, %s3
  %s5 = sld [smem:[#allocation0]]
  $region50: #{tpu_custom_call.1} parent=0
    _
  %s7 = ssub.s32 1, %s5
  %s8 = scalar_select 0, %s7, %s5
  $region1: #{tpu_custom_call.1} parent=0
    #allocation4 [shape = 'u8[8192]{0}', space=vmem, size = 0x2000, scoped, tag = 'input window, operand 0, single buffered']
    #allocation5 [shape = 's32[1]{0}', space=sflag, size = 0x4, scoped, tag = 'scoped memory for tpu_custom_call.1']
    #allocation6 [shape = 's32[1]{0}', space=sflag, size = 0x4, scoped, tag = 'scoped memory for tpu_custom_call.1']
    #allocation7 [shape = 'u8[8192]{0}', space=vmem, size = 0x2000, scoped, tag = 'input window, operand 1, single buffered']
    #allocation8 [shape = 's32[1]{0}', space=sflag, size = 0x4, scoped, tag = 'scoped memory for tpu_custom_call.1']
    #allocation9 [shape = 'u8[1024]{0}', space=vmem, size = 0x400, scoped, tag = 'output window, operand 0, single buffered']
    #allocation10 [shape = 'u8[1024]{0}', space=vmem, size = 0x400, scoped, tag = 'output window, operand 1, single buffered']
    #allocation11 [shape = 's32[1]{0}', space=sflag, size = 0x4, scoped, tag = 'scoped memory for tpu_custom_call.1']
    %9 = vsyncpa [#allocation5], 0
    %10 = vsyncpa [#allocation8], 0
    %11 = vsyncpa [#allocation6], 0
    %12 = vsyncpa [#allocation11], 0
    // Predicated region
    $region2: #{tpu_custom_call.1} parent=1 // pred_check
      _
    $region3: #{tpu_custom_call.1} parent=1 // pred_check_branch
      %14 = sbr.rel (0) target = $region5
    $region4: #{tpu_custom_call.1} parent=1 // pred_region
      %s15 = sadd.s32 0, 0
      %p16 = scmp.lt.s32.totalorder %s15, 0
      %s17 = scalar_select %p16, %s15, 0
      %s18 = smul.u32 8, %s17
      %s20 = ssub.s32 256, 256
      %21 = vsyncadd [#allocation5], %s20
      %s22 = smul.addr %s18, 32
      %s23 = scalar_lea.hbm %s0, %s22
      %s25 = sshll.u32 [#allocation4], 4
      %s26 = int_to_ptr.vmem [resolvable:$true] %s25
      %28 = dma.hbm_to_vmem [thread:$0]  %s23, 256, %s26, [#allocation5]
    $region5: #{tpu_custom_call.1} parent=1 // pred_fallthru
      _
    // Predicated region
    $region6: #{tpu_custom_call.1} parent=1 // pred_check
      _
    $region7: #{tpu_custom_call.1} parent=1 // pred_check_branch
      %30 = sbr.rel (0) target = $region9
    $region8: #{tpu_custom_call.1} parent=1 // pred_region
      %s31 = sadd.s32 0, 0
      %p32 = scmp.lt.s32.totalorder %s31, 0
      %s33 = scalar_select %p32, %s31, 0
      %s34 = smul.u32 8, %s33
      %s36 = ssub.s32 256, 256
      %37 = vsyncadd [#allocation8], %s36
      %s38 = smul.addr %s34, 32
      %s39 = scalar_lea.hbm %s1, %s38
      %s41 = sshll.u32 [#allocation7], 4
      %s42 = int_to_ptr.vmem [resolvable:$true] %s41
      %44 = dma.hbm_to_vmem [thread:$0]  %s39, 256, %s42, [#allocation8]
    $region9: #{tpu_custom_call.1} parent=1 // pred_fallthru
      _
    // Predicated region
    $region10: #{tpu_custom_call.1} parent=1 // pred_check
      _
    $region11: #{tpu_custom_call.1} parent=1 // pred_check_branch
      %46 = sbr.rel (0) target = $region13
    $region12: #{tpu_custom_call.1} parent=1 // pred_region
      %47 = dma.done [#allocation5], 256
    $region13: #{tpu_custom_call.1} parent=1 // pred_fallthru
      _
    // Predicated region
    $region14: #{tpu_custom_call.1} parent=1 // pred_check
      _
    $region15: #{tpu_custom_call.1} parent=1 // pred_check_branch
      %49 = sbr.rel (0) target = $region17
    $region16: #{tpu_custom_call.1} parent=1 // pred_region
      %50 = dma.done [#allocation8], 256
    $region17: #{tpu_custom_call.1} parent=1 // pred_fallthru
      _
    %s51 = sadd.s32 0, 0
    %p52 = scmp.lt.s32.totalorder %s51, 0
    %s53 = scalar_select %p52, %s51, 0
    %s54 = smul.u32 8, %s53
    %s55 = sadd.s32 0, 0
    %p56 = scmp.lt.s32.totalorder %s55, 0
    %s57 = scalar_select %p56, %s55, 0
    %s58 = smul.u32 8, %s57
    %p59 = scmp.eq.s32.totalorder 0, 0
    // Predicated region
    $region18: #{tpu_custom_call.1} parent=1 // pred_check
      %p60 = pneg %p59
    $region19: #{tpu_custom_call.1} parent=1 // pred_check_branch
      %62 = sbr.rel (%p60) target = $region21
    $region20: #{tpu_custom_call.1} parent=1 // pred_region
      %vm63 = vcmask 1024
      %64 = vst.msk [vmem:[#allocation2] sm:$0x3] %vm63, 0.0
      %65 = vst.msk [vmem:[#allocation3] sm:$0x3] %vm63, 0.0
    $region21: #{tpu_custom_call.1} parent=1 // pred_fallthru
      _
    %v66 = vld [vmem:[#allocation4] sm:$0xff]
    %v67 = vld [vmem:[#allocation4 + $0x8] sm:$0xff]
    %v68 = vld [vmem:[#allocation7] sm:$0xff]
    %v69 = vld [vmem:[#allocation7 + $0x8] sm:$0xff]
    %s70 = sadd.s32 0, 0
    %s71 = smul.u32 %s70, 1024
    %s72 = ssub.s32 1024, %s71
    %p73 = scmp.ge.s32.totalorder %s72, 1024
    // Predicated region
    $region22: #{tpu_custom_call.1} parent=1 // pred_check
      %p74 = pneg %p73
    $region23: #{tpu_custom_call.1} parent=1 // pred_check_branch
      %76 = sbr.rel (%p74) target = $region25
    $region24: #{tpu_custom_call.1} parent=1 // pred_region
      %v77 = vmul.f32 %v66, %v68
      %v78 = vmul.f32 %v67, %v69
      %v79 = vadd.f32 %v66, %v68
      %v80 = vadd.f32 %v67, %v69
      %v81 = vld [vmem:[#allocation2] sm:$0x3]
      %v84 = vcombine.high %v77, %v77
      %v86 = vunpack.c.l.s4 1983009808
      %v87 = vunpack.c.0.s8 %v86
      %v88 = vlaneseq
      %v89 = vshrl.u32 %v88, 7
      %v90 = vsub.s32 %v87, %v89
      %v91 = vrot.slane %v77, %v90
      %v93 = vunpack.c.l.s4 1983009808
      %v94 = vunpack.c.0.s8 %v93
      %v95 = vlaneseq
      %v96 = vshrl.u32 %v95, 7
      %v97 = vsub.s32 %v94, %v96
      %v98 = vrot.slane %v84, %v97
      %v99 = vcombine.high %v91, %v91
      %v100 = vcombine.high %v98, %v98
      %v101 = vcombine.high %v78, %v78
      %v103 = vunpack.c.l.s4 1983009808
      %v104 = vunpack.c.0.s8 %v103
      %v105 = vlaneseq
      %v106 = vshrl.u32 %v105, 7
      %v107 = vsub.s32 %v104, %v106
      %v108 = vrot.slane %v78, %v107
      %v110 = vunpack.c.l.s4 1983009808
      %v111 = vunpack.c.0.s8 %v110
      %v112 = vlaneseq
      %v113 = vshrl.u32 %v112, 7
      %v114 = vsub.s32 %v111, %v113
      %v115 = vrot.slane %v101, %v114
      %v116 = vcombine.high %v108, %v108
      %v117 = vcombine.high %v115, %v115
      %vm126 = vcmask 1041408
      %v127 = vsel %vm126, %v91, 0.0
      %v128 = vsel %vm126, %v99, 0.0
      %v129 = vadd.f32 %v127, %v128
      %v130 = vsel %vm126, %v98, 0.0
      %v131 = vadd.f32 %v129, %v130
      %v132 = vsel %vm126, %v100, 0.0
      %v133 = vadd.f32 %v131, %v132
      %v134 = vsel %vm126, %v108, 0.0
      %v135 = vadd.f32 %v133, %v134
      %v136 = vsel %vm126, %v116, 0.0
      %v137 = vadd.f32 %v135, %v136
      %v138 = vsel %vm126, %v115, 0.0
      %v139 = vadd.f32 %v137, %v138
      %v140 = vsel %vm126, %v117, 0.0
      %v141 = vadd.f32 %v139, %v140
      %142 = vadd.xlane.f32.xlu0 %v141
      %v143 = vpop.xlane.xlu0 %142
      %v144 = vadd.f32 %v81, %v143
      %vm145 = vcmask 1024
      %146 = vst.msk [vmem:[#allocation2] sm:$0x3] %vm145, %v144
      %v147 = vld [vmem:[#allocation3] sm:$0x3]
      %v150 = vcombine.high %v79, %v79
      %v152 = vunpack.c.l.s4 1983009808
      %v153 = vunpack.c.0.s8 %v152
      %v154 = vlaneseq
      %v155 = vshrl.u32 %v154, 7
      %v156 = vsub.s32 %v153, %v155
      %v157 = vrot.slane %v79, %v156
      %v159 = vunpack.c.l.s4 1983009808
      %v160 = vunpack.c.0.s8 %v159
      %v161 = vlaneseq
      %v162 = vshrl.u32 %v161, 7
      %v163 = vsub.s32 %v160, %v162
      %v164 = vrot.slane %v150, %v163
      %v165 = vcombine.high %v157, %v157
      %v166 = vcombine.high %v164, %v164
      %v167 = vcombine.high %v80, %v80
      %v169 = vunpack.c.l.s4 1983009808
      %v170 = vunpack.c.0.s8 %v169
      %v171 = vlaneseq
      %v172 = vshrl.u32 %v171, 7
      %v173 = vsub.s32 %v170, %v172
      %v174 = vrot.slane %v80, %v173
      %v176 = vunpack.c.l.s4 1983009808
      %v177 = vunpack.c.0.s8 %v176
      %v178 = vlaneseq
      %v179 = vshrl.u32 %v178, 7
      %v180 = vsub.s32 %v177, %v179
      %v181 = vrot.slane %v167, %v180
      %v182 = vcombine.high %v174, %v174
      %v183 = vcombine.high %v181, %v181
      %v192 = vsel %vm126, %v157, 0.0
      %v193 = vsel %vm126, %v165, 0.0
      %v194 = vadd.f32 %v192, %v193
      %v195 = vsel %vm126, %v164, 0.0
      %v196 = vadd.f32 %v194, %v195
      %v197 = vsel %vm126, %v166, 0.0
      %v198 = vadd.f32 %v196, %v197
      %v199 = vsel %vm126, %v174, 0.0
      %v200 = vadd.f32 %v198, %v199
      %v201 = vsel %vm126, %v182, 0.0
      %v202 = vadd.f32 %v200, %v201
      %v203 = vsel %vm126, %v181, 0.0
      %v204 = vadd.f32 %v202, %v203
      %v205 = vsel %vm126, %v183, 0.0
      %v206 = vadd.f32 %v204, %v205
      %207 = vadd.xlane.f32.xlu0 %v206
      %v208 = vpop.xlane.xlu0 %207
      %v209 = vadd.f32 %v147, %v208
      %210 = vst.msk [vmem:[#allocation3] sm:$0x3] %vm145, %v209
    $region25: #{tpu_custom_call.1} parent=1 // pred_fallthru
      _
    %p211 = scmp.lt.s32.totalorder %s72, 1024
    // Predicated region
    $region26: #{tpu_custom_call.1} parent=1 // pred_check
      %p212 = pneg %p211
    $region27: #{tpu_custom_call.1} parent=1 // pred_check_branch
      %214 = sbr.rel (%p212) target = $region29
    $region28: #{tpu_custom_call.1} parent=1 // pred_region
      %v215 = vlaneseq
      %v216 = vand.u32 %v215, 127
      %v217 = vadd.s32 %v216, 128
      %v218 = vadd.s32 %v216, 256
      %v219 = vadd.s32 %v216, 384
      %v220 = vadd.s32 %v216, 512
      %v221 = vadd.s32 %v216, 640
      %v222 = vadd.s32 %v216, 768
      %v223 = vadd.s32 %v216, 896
      %v224 = vstv %s72
      %vm225 = vcmp.lt.s32.totalorder %v216, %v224
      %vm226 = vcmp.lt.s32.totalorder %v217, %v224
      %vm227 = vcmp.lt.s32.totalorder %v218, %v224
      %vm228 = vcmp.lt.s32.totalorder %v219, %v224
      %vm229 = vcmp.lt.s32.totalorder %v220, %v224
      %vm230 = vcmp.lt.s32.totalorder %v221, %v224
      %vm231 = vcmp.lt.s32.totalorder %v222, %v224
      %vm232 = vcmp.lt.s32.totalorder %v223, %v224
      %v233 = vmul.f32 %v66, %v68
      %v234 = vmul.f32 %v67, %v69
      %v237 = vcombine.high %v233, %v233
      %v239 = vunpack.c.l.s4 1983009808
      %v240 = vunpack.c.0.s8 %v239
      %v241 = vlaneseq
      %v242 = vshrl.u32 %v241, 7
      %v243 = vsub.s32 %v240, %v242
      %v244 = vrot.slane %v233, %v243
      %v246 = vunpack.c.l.s4 1983009808
      %v247 = vunpack.c.0.s8 %v246
      %v248 = vlaneseq
      %v249 = vshrl.u32 %v248, 7
      %v250 = vsub.s32 %v247, %v249
      %v251 = vrot.slane %v237, %v250
      %v252 = vcombine.high %v244, %v244
      %v253 = vcombine.high %v251, %v251
      %v254 = vcombine.high %v234, %v234
      %v256 = vunpack.c.l.s4 1983009808
      %v257 = vunpack.c.0.s8 %v256
      %v258 = vlaneseq
      %v259 = vshrl.u32 %v258, 7
      %v260 = vsub.s32 %v257, %v259
      %v261 = vrot.slane %v234, %v260
      %v263 = vunpack.c.l.s4 1983009808
      %v264 = vunpack.c.0.s8 %v263
      %v265 = vlaneseq
      %v266 = vshrl.u32 %v265, 7
      %v267 = vsub.s32 %v264, %v266
      %v268 = vrot.slane %v254, %v267
      %v269 = vcombine.high %v261, %v261
      %v270 = vcombine.high %v268, %v268
      %v279 = vsel %vm225, %v244, 0.0
      %v280 = vsel %vm226, %v252, 0.0
      %v281 = vsel %vm227, %v251, 0.0
      %v282 = vsel %vm228, %v253, 0.0
      %v283 = vsel %vm229, %v261, 0.0
      %v284 = vsel %vm230, %v269, 0.0
      %v285 = vsel %vm231, %v268, 0.0
      %v286 = vsel %vm232, %v270, 0.0
      %v287 = vadd.f32 %v66, %v68
      %v288 = vadd.f32 %v67, %v69
      %v291 = vcombine.high %v287, %v287
      %v293 = vunpack.c.l.s4 1983009808
      %v294 = vunpack.c.0.s8 %v293
      %v295 = vlaneseq
      %v296 = vshrl.u32 %v295, 7
      %v297 = vsub.s32 %v294, %v296
      %v298 = vrot.slane %v287, %v297
      %v300 = vunpack.c.l.s4 1983009808
      %v301 = vunpack.c.0.s8 %v300
      %v302 = vlaneseq
      %v303 = vshrl.u32 %v302, 7
      %v304 = vsub.s32 %v301, %v303
      %v305 = vrot.slane %v291, %v304
      %v306 = vcombine.high %v298, %v298
      %v307 = vcombine.high %v305, %v305
      %v308 = vcombine.high %v288, %v288
      %v310 = vunpack.c.l.s4 1983009808
      %v311 = vunpack.c.0.s8 %v310
      %v312 = vlaneseq
      %v313 = vshrl.u32 %v312, 7
      %v314 = vsub.s32 %v311, %v313
      %v315 = vrot.slane %v288, %v314
      %v317 = vunpack.c.l.s4 1983009808
      %v318 = vunpack.c.0.s8 %v317
      %v319 = vlaneseq
      %v320 = vshrl.u32 %v319, 7
      %v321 = vsub.s32 %v318, %v320
      %v322 = vrot.slane %v308, %v321
      %v323 = vcombine.high %v315, %v315
      %v324 = vcombine.high %v322, %v322
      %v333 = vsel %vm225, %v298, 0.0
      %v334 = vsel %vm226, %v306, 0.0
      %v335 = vsel %vm227, %v305, 0.0
      %v336 = vsel %vm228, %v307, 0.0
      %v337 = vsel %vm229, %v315, 0.0
      %v338 = vsel %vm230, %v323, 0.0
      %v339 = vsel %vm231, %v322, 0.0
      %v340 = vsel %vm232, %v324, 0.0
      %v341 = vld [vmem:[#allocation2] sm:$0x3]
      %vm342 = vcmask 1041408
      %v343 = vsel %vm342, %v279, 0.0
      %v344 = vsel %vm342, %v280, 0.0
      %v345 = vadd.f32 %v343, %v344
      %v346 = vsel %vm342, %v281, 0.0
      %v347 = vadd.f32 %v345, %v346
      %v348 = vsel %vm342, %v282, 0.0
      %v349 = vadd.f32 %v347, %v348
      %v350 = vsel %vm342, %v283, 0.0
      %v351 = vadd.f32 %v349, %v350
      %v352 = vsel %vm342, %v284, 0.0
      %v353 = vadd.f32 %v351, %v352
      %v354 = vsel %vm342, %v285, 0.0
      %v355 = vadd.f32 %v353, %v354
      %v356 = vsel %vm342, %v286, 0.0
      %v357 = vadd.f32 %v355, %v356
      %358 = vadd.xlane.f32.xlu0 %v357
      %v359 = vpop.xlane.xlu0 %358
      %v360 = vadd.f32 %v341, %v359
      %vm361 = vcmask 1024
      %362 = vst.msk [vmem:[#allocation2] sm:$0x3] %vm361, %v360
      %v363 = vld [vmem:[#allocation3] sm:$0x3]
      %v364 = vsel %vm342, %v333, 0.0
      %v365 = vsel %vm342, %v334, 0.0
      %v366 = vadd.f32 %v364, %v365
      %v367 = vsel %vm342, %v335, 0.0
      %v368 = vadd.f32 %v366, %v367
      %v369 = vsel %vm342, %v336, 0.0
      %v370 = vadd.f32 %v368, %v369
      %v371 = vsel %vm342, %v337, 0.0
      %v372 = vadd.f32 %v370, %v371
      %v373 = vsel %vm342, %v338, 0.0
      %v374 = vadd.f32 %v372, %v373
      %v375 = vsel %vm342, %v339, 0.0
      %v376 = vadd.f32 %v374, %v375
      %v377 = vsel %vm342, %v340, 0.0
      %v378 = vadd.f32 %v376, %v377
      %379 = vadd.xlane.f32.xlu0 %v378
      %v380 = vpop.xlane.xlu0 %379
      %v381 = vadd.f32 %v363, %v380
      %382 = vst.msk [vmem:[#allocation3] sm:$0x3] %vm361, %v381
    $region29: #{tpu_custom_call.1} parent=1 // pred_fallthru
      _
    // Predicated region
    $region30: #{tpu_custom_call.1} parent=1 // pred_check
      %p383 = pneg %p59
    $region31: #{tpu_custom_call.1} parent=1 // pred_check_branch
      %385 = sbr.rel (%p383) target = $region33
    $region32: #{tpu_custom_call.1} parent=1 // pred_region
      %v386 = vld [vmem:[#allocation2] sm:$0x3]
      %vm387 = vcmask 1024
      %388 = vst.msk [vmem:[#allocation9] sm:$0x3] %vm387, %v386
      %v389 = vld [vmem:[#allocation3] sm:$0x3]
      %390 = vst.msk [vmem:[#allocation10] sm:$0x3] %vm387, %v389
    $region33: #{tpu_custom_call.1} parent=1 // pred_fallthru
      _
    // Predicated region
    $region34: #{tpu_custom_call.1} parent=1 // pred_check
      _
    $region35: #{tpu_custom_call.1} parent=1 // pred_check_branch
      %392 = sbr.rel (0) target = $region37
    $region36: #{tpu_custom_call.1} parent=1 // pred_region
      %s394 = ssub.s32 32, 32
      %395 = vsyncadd [#allocation6], %s394
      %s397 = sshll.u32 [#allocation9], 4
      %s398 = int_to_ptr.vmem [resolvable:$true] %s397
      %400 = dma.vmem_to_hbm [thread:$0]  %s398, 32, %s2, [#allocation6]
    $region37: #{tpu_custom_call.1} parent=1 // pred_fallthru
      _
    // Predicated region
    $region38: #{tpu_custom_call.1} parent=1 // pred_check
      _
    $region39: #{tpu_custom_call.1} parent=1 // pred_check_branch
      %402 = sbr.rel (0) target = $region41
    $region40: #{tpu_custom_call.1} parent=1 // pred_region
      %s404 = ssub.s32 32, 32
      %405 = vsyncadd [#allocation11], %s404
      %s407 = sshll.u32 [#allocation10], 4
      %s408 = int_to_ptr.vmem [resolvable:$true] %s407
      %410 = dma.vmem_to_hbm [thread:$0]  %s408, 32, %s3, [#allocation11]
    $region41: #{tpu_custom_call.1} parent=1 // pred_fallthru
      _
    // Predicated region
    $region42: #{tpu_custom_call.1} parent=1 // pred_check
      _
    $region43: #{tpu_custom_call.1} parent=1 // pred_check_branch
      %412 = sbr.rel (0) target = $region45
    $region44: #{tpu_custom_call.1} parent=1 // pred_region
      %413 = dma.done [#allocation6], 32
    $region45: #{tpu_custom_call.1} parent=1 // pred_fallthru
      _
    // Predicated region
    $region46: #{tpu_custom_call.1} parent=1 // pred_check
      _
    $region47: #{tpu_custom_call.1} parent=1 // pred_check_branch
      %415 = sbr.rel (0) target = $region49
    $region48: #{tpu_custom_call.1} parent=1 // pred_region
      %416 = dma.done [#allocation11], 32
    $region49: #{tpu_custom_call.1} parent=1 // pred_fallthru
      _
    %417 = vsyncpa [#allocation5], 1
    %418 = vsyncpa [#allocation8], 1
    %419 = vsyncpa [#allocation6], 1
    %420 = vsyncpa [#allocation11], 1

</llo_original>
